<compile_context>
chip_gen: v7x
topology: tpu7x:2x2x1
jax: 0.10.0
libtpu: 0.0.40
codegen_flags: <defaults>
</compile_context>

<pallas_src>
import functools

import jax
import jax.numpy as jnp
from jax.experimental import pallas as pl
from jax.experimental.pallas import tpu as pltpu


def cbam_channel_kernel(x_ref, w1t_ref, w2t_ref, o_ref, *, inv_hw):
    # x_ref/o_ref: (nb, C, HW)   w1t_ref: (C, C_red)   w2t_ref: (C_red, C)
    nb = x_ref.shape[0]

    # ---- Phase 1: spatial avg/max pooling over the whole block (lane-dim reduce). ----
    s = jnp.sum(x_ref[...], axis=-1, dtype=jnp.float32)          # (nb, C)
    m = jnp.max(x_ref[...], axis=-1).astype(jnp.float32)         # (nb, C)
    pooled = jnp.concatenate([s * inv_hw, m], axis=0)            # (2*nb, C), f32

    # ---- Phase 2: fused fc for both pooled stats of all images at once (tiny matmuls). ----
    h = jnp.maximum(
        jnp.dot(pooled, w1t_ref[...], preferred_element_type=jnp.float32), 0.0
    )                                                            # (2*nb, C_red)
    fc_out = jnp.dot(h, w2t_ref[...], preferred_element_type=jnp.float32)  # (2*nb, C)
    gate = jax.nn.sigmoid(fc_out[:nb] + fc_out[nb:])             # (nb, C), f32
    gate = gate[:, :, None].astype(x_ref.dtype)                  # (nb, C, 1)

    # ---- Phase 3: re-read x from VMEM and apply the gate (one broadcast multiply). ----
    o_ref[...] = (x_ref[...] * gate).astype(o_ref.dtype)


def _pick_nb(N, bytes_per_image, block_budget_bytes):
    """Images per grid step: fit double-buffered in+out under the budget; prefer an even
    grid_n (ideally >= 4) so v7x's two TensorCores split the parallel batch axis."""
    nb_budget = max(1, block_budget_bytes // (4 * bytes_per_image))
    divisors = [d for d in range(1, N + 1) if N % d == 0 and d <= nb_budget]
    even4 = [d for d in divisors if (N // d) % 2 == 0 and (N // d) >= 4]
    even = [d for d in divisors if (N // d) % 2 == 0]
    if even4:
        return max(even4)
    if even:
        return max(even)
    return max(divisors)


def cbam_channel(x, w1, w2):
    """CBAM channel attention. x: (N, C, H, W); w1: (C//r, C); w2: (C, C//r)."""
    N, C, H, W = x.shape
    HW = H * W
    x3 = x.reshape(N, C, HW)

    # Convert + transpose weights once (fc matmuls are tiny; no per-step cast in-kernel).
    w1t = jnp.asarray(w1, jnp.float32).T          # (C, C_red)
    w2t = jnp.asarray(w2, jnp.float32).T          # (C_red, C)

    try:
        vmem_cap = int(pltpu.get_tpu_info().vmem_capacity_bytes)
    except Exception:
        vmem_cap = 64 << 20                        # conservative (v7x per-TC)

    itemsize = jnp.dtype(x.dtype).itemsize
    bytes_per_image = C * HW * itemsize
    block_budget = (vmem_cap * 3) // 8             # ~24 MiB @ 64 MiB, ~48 MiB @ 128 MiB
    nb = _pick_nb(N, bytes_per_image, block_budget)
    grid_n = N // nb

    w_bytes = (w1t.size + w2t.size) * 4
    vmem_needed = 4 * nb * bytes_per_image + 2 * w_bytes + (4 << 20)
    vmem_limit = int(min(vmem_cap - (8 << 20), max(16 << 20, vmem_needed)))
    # TODO(synk): for very large feature maps where one (C, HW) slab x 4 buffers exceeds
    # VMEM (e.g. C=256 @ 112x112 on v7x's 64 MiB), switch to an HW-chunked two-pass
    # structure (x in memory_space=pl.ANY + manual make_async_copy double-buffering).

    kernel = functools.partial(cbam_channel_kernel, inv_hw=1.0 / HW)
    out3 = pl.pallas_call(
        kernel,
        out_shape=jax.ShapeDtypeStruct((N, C, HW), x.dtype),
        grid_spec=pltpu.PrefetchScalarGridSpec(
            num_scalar_prefetch=0,
            grid=(grid_n,),
            in_specs=[
                pl.BlockSpec((nb, C, HW), lambda n: (n, 0, 0)),
                pl.BlockSpec(w1t.shape, lambda n: (0, 0)),
                pl.BlockSpec(w2t.shape, lambda n: (0, 0)),
            ],
            out_specs=pl.BlockSpec((nb, C, HW), lambda n: (n, 0, 0)),
        ),
        compiler_params=pltpu.CompilerParams(
            dimension_semantics=("parallel",),
            vmem_limit_bytes=vmem_limit,
        ),
    )(x3, w1t, w2t)

    return out3.reshape(N, C, H, W)


def cbam_channel_ref(x, w1, w2):
    """Pure-JAX reference mirroring the PyTorch forward."""
    avg = jnp.mean(x, axis=(2, 3))          # (N, C)
    mx = jnp.max(x, axis=(2, 3))            # (N, C)

    def fc(v):
        h = jnp.maximum(v @ w1.T, 0.0)      # (N, C_red)
        return h @ w2.T                     # (N, C)

    gate = jax.nn.sigmoid(fc(avg) + fc(mx))  # (N, C)
    return x * gate[:, :, None, None]


if __name__ == "__main__":
    # Small shapes consistent with the module: reduction=16 => C must be >= 16.
    # H = W = 14 -> HW = 196, NOT a multiple of 128, so the ragged-lane-tail path is
    # exercised.  Inputs are shifted negative so an unmasked max would be wrong.
    N, C, H, W = 2, 32, 14, 14
    reduction = 16
    C_red = C // reduction  # 2

    key = jax.random.PRNGKey(0)
    kx, k1, k2 = jax.random.split(key, 3)
    x = jax.random.normal(kx, (N, C, H, W), dtype=jnp.float32) - 3.0
    # Deterministic synthetic weights (Conv2d 1x1, bias=False => pure channel matmuls).
    w1 = 0.1 * jax.random.normal(k1, (C_red, C), dtype=jnp.float32)  # fc[0].weight (squeezed)
    w2 = 0.1 * jax.random.normal(k2, (C, C_red), dtype=jnp.float32)  # fc[2].weight (squeezed)

    out = jax.block_until_ready(cbam_channel(x, w1, w2))
    ref = jax.block_until_ready(cbam_channel_ref(x, w1, w2))

    assert out.shape == x.shape and out.dtype == x.dtype
    assert jnp.allclose(out, ref, atol=1e-5, rtol=1e-5), "mismatch vs reference"
    print("KERNEL_OK")
</pallas_src>

<mosaic_0001>
module attributes {stable_mosaic.version = 11 : i64} {
  func.func @cbam_channel_kernel(%arg0: i32, %arg1: memref<1x32x196xf32, #tpu.memory_space<vmem>>, %arg2: memref<32x2xf32, #tpu.memory_space<vmem>>, %arg3: memref<2x32xf32, #tpu.memory_space<vmem>>, %arg4: memref<1x32x196xf32, #tpu.memory_space<vmem>>) attributes {dimension_semantics = [#tpu.dimension_semantics<parallel>], iteration_bounds = array<i64: 2>, scalar_prefetch = 0 : i64, scratch_operands = 0 : i64, tpu.core_type = #tpu.core_type<tc>, window_params = [{transform_indices = @transform_0, window_bounds = array<i64: 1, 32, 196>}, {pipeline_mode = #tpu.pipeline_mode<synchronous>, transform_indices = @transform_1, window_bounds = array<i64: 32, 2>}, {pipeline_mode = #tpu.pipeline_mode<synchronous>, transform_indices = @transform_2, window_bounds = array<i64: 2, 32>}, {transform_indices = @transform_3, window_bounds = array<i64: 1, 32, 196>}]} {
    %c0 = arith.constant 0 : index
    %c0_0 = arith.constant 0 : index
    %c0_1 = arith.constant 0 : index
    %0 = vector.load %arg1[%c0, %c0_0, %c0_1] : memref<1x32x196xf32, #tpu.memory_space<vmem>>, vector<1x32x196xf32>
    %cst = arith.constant dense<0.000000e+00> : vector<1x32xf32>
    %1 = vector.multi_reduction <add>, %0, %cst [2] : vector<1x32x196xf32> to vector<1x32xf32>
    %c0_2 = arith.constant 0 : index
    %c0_3 = arith.constant 0 : index
    %c0_4 = arith.constant 0 : index
    %2 = vector.load %arg1[%c0_2, %c0_3, %c0_4] : memref<1x32x196xf32, #tpu.memory_space<vmem>>, vector<1x32x196xf32>
    %cst_5 = arith.constant dense<0xFF800000> : vector<1x32xf32>
    %3 = vector.multi_reduction <maximumf>, %2, %cst_5 [2] : vector<1x32x196xf32> to vector<1x32xf32>
    %cst_6 = arith.constant 0.00510204071 : f32
    %4 = vector.broadcast %cst_6 : f32 to vector<1x32xf32>
    %5 = arith.mulf %1, %4 : vector<1x32xf32>
    %6 = tpu.concatenate %5, %3 in 0 : vector<1x32xf32>, vector<1x32xf32> -> vector<2x32xf32>
    %c0_7 = arith.constant 0 : index
    %c0_8 = arith.constant 0 : index
    %7 = vector.load %arg2[%c0_7, %c0_8] : memref<32x2xf32, #tpu.memory_space<vmem>>, vector<32x2xf32>
    %cst_9 = arith.constant dense<0.000000e+00> : vector<2x2xf32>
    %8 = tpu.matmul %6, %7, %cst_9 {dimension_numbers = #tpu.dot_dimension_numbers<[1], [0], [0], [1], [0, 0, 1, 1], [], []>} : vector<2x32xf32>, vector<32x2xf32>, vector<2x2xf32> -> vector<2x2xf32>
    %cst_10 = arith.constant 0.000000e+00 : f32
    %9 = vector.broadcast %cst_10 : f32 to vector<2x2xf32>
    %10 = arith.maximumf %8, %9 : vector<2x2xf32>
    %c0_11 = arith.constant 0 : index
    %c0_12 = arith.constant 0 : index
    %11 = vector.load %arg3[%c0_11, %c0_12] : memref<2x32xf32, #tpu.memory_space<vmem>>, vector<2x32xf32>
    %cst_13 = arith.constant dense<0.000000e+00> : vector<2x32xf32>
    %12 = tpu.matmul %10, %11, %cst_13 {dimension_numbers = #tpu.dot_dimension_numbers<[1], [0], [0], [1], [0, 0, 1, 1], [], []>} : vector<2x2xf32>, vector<2x32xf32>, vector<2x32xf32> -> vector<2x32xf32>
    %13 = vector.extract_strided_slice %12 {offsets = [0, 0], sizes = [1, 32], strides = [1, 1]} : vector<2x32xf32> to vector<1x32xf32>
    %14 = vector.extract_strided_slice %12 {offsets = [1, 0], sizes = [1, 32], strides = [1, 1]} : vector<2x32xf32> to vector<1x32xf32>
    %15 = arith.addf %13, %14 : vector<1x32xf32>
    %16 = arith.negf %15 : vector<1x32xf32>
    %17 = math.exp %16 : vector<1x32xf32>
    %cst_14 = arith.constant 1.000000e+00 : f32
    %18 = vector.broadcast %cst_14 : f32 to vector<1x32xf32>
    %19 = arith.addf %18, %17 : vector<1x32xf32>
    %20 = arith.divf %18, %19 : vector<1x32xf32>
    %21 = vector.shape_cast %20 : vector<1x32xf32> to vector<1x32x1xf32>
    %c0_15 = arith.constant 0 : index
    %c0_16 = arith.constant 0 : index
    %c0_17 = arith.constant 0 : index
    %22 = vector.load %arg1[%c0_15, %c0_16, %c0_17] : memref<1x32x196xf32, #tpu.memory_space<vmem>>, vector<1x32x196xf32>
    %23 = vector.broadcast %21 : vector<1x32x1xf32> to vector<1x32x196xf32>
    %24 = arith.mulf %22, %23 : vector<1x32x196xf32>
    %c0_18 = arith.constant 0 : index
    %c0_19 = arith.constant 0 : index
    %c0_20 = arith.constant 0 : index
    %25 = vector.load %arg4[%c0_18, %c0_19, %c0_20] : memref<1x32x196xf32, #tpu.memory_space<vmem>>, vector<1x32x196xf32>
    tpu.vector_store %arg4[%c0_18, %c0_19, %c0_20], %24 {strides = array<i32>} : memref<1x32x196xf32, #tpu.memory_space<vmem>>, vector<1x32x196xf32>,
    return
  }
  func.func @transform_0(%arg0: i32) -> (i32, i32, i32) {
    %c0_i32 = arith.constant 0 : i32
    %c0_i32_0 = arith.constant 0 : i32
    %c0_i32_1 = arith.constant 0 : i32
    return %arg0, %c0_i32, %c0_i32_0 : i32, i32, i32
  }
  func.func @transform_1(%arg0: i32) -> (i32, i32) {
    %c0_i32 = arith.constant 0 : i32
    %c0_i32_0 = arith.constant 0 : i32
    %c0_i32_1 = arith.constant 0 : i32
    return %c0_i32, %c0_i32_0 : i32, i32
  }
  func.func @transform_2(%arg0: i32) -> (i32, i32) {
    %c0_i32 = arith.constant 0 : i32
    %c0_i32_0 = arith.constant 0 : i32
    %c0_i32_1 = arith.constant 0 : i32
    return %c0_i32, %c0_i32_0 : i32, i32
  }
  func.func @transform_3(%arg0: i32) -> (i32, i32, i32) {
    %c0_i32 = arith.constant 0 : i32
    %c0_i32_0 = arith.constant 0 : i32
    %c0_i32_1 = arith.constant 0 : i32
    return %arg0, %c0_i32, %c0_i32_0 : i32, i32, i32
  }
}

</mosaic_0001>

<llo_original>
// kernel: tpu_custom_call.1
$region0: #{tpu_custom_call.1}
  #allocation0 [shape = 'u32[]', space=smem, size = 0x4, offset = 0x4, fixed_abs, tag = 'smem constant byte address 0x4 - core index']
  #allocation1 [shape = 'u32[144,128]{1,0:T(1,128)}', space=vmem, size = 0x12000, scoped, tag = 'internal scratch']
  %s0 = inlined_call_operand.hbm [shape: f32[2,32,196], index: 0, kind: input, shape index: {}]
  %s1 = inlined_call_operand.vmem [shape: f32[32,2], index: 1, kind: input, shape index: {}]
  %s2 = inlined_call_operand.vmem [shape: f32[2,32], index: 2, kind: input, shape index: {}]
  %s3 = inlined_call_operand.hbm [shape: f32[2,32,196], index: 3, kind: output, shape index: {}]
  %s4 = sld [smem:[#allocation0]]
  $region49: #{tpu_custom_call.1} parent=0
    _
  %s6 = ssub.s32 1, %s4
  %s7 = scalar_select 0, %s6, %s4
  $region1: #{tpu_custom_call.1} parent=0
    #allocation2 [shape = 'u8[65536]{0}', space=vmem, size = 0x10000, scoped, tag = 'input window, operand 0']
    #allocation3 [shape = 's32[2]{0}', space=sflag, size = 0x8, scoped, tag = 'scoped memory for tpu_custom_call.1']
    #allocation4 [shape = 's32[2]{0}', space=sflag, size = 0x8, scoped, tag = 'scoped memory for tpu_custom_call.1']
    #allocation5 [shape = 'u8[65536]{0}', space=vmem, size = 0x10000, scoped, tag = 'output window, operand 0']
    %8 = vsyncpa [#allocation3], 0
    %s9 = scalar_lea.sflag [#allocation3], 1
    %10 = vsyncpa %s9, 0
    %11 = vsyncpa [#allocation4], 0
    %s12 = scalar_lea.sflag [#allocation4], 1
    %13 = vsyncpa %s12, 0
    loop: start=0, step=1, limit=4
    $region2: #{tpu_custom_call.1} parent=1 // loop_pre_header
      _
    $region3: #{tpu_custom_call.1} parent=1 // loop_header
      %s15 = sphi 0, %s19
      %p16 = scmp.ge.s32.totalorder %s15, 4
      %s25 = sphi 0, %s27
      %s28 = sphi 0, %s25
      %s29 = sphi 0, %s28
      %s45 = sphi 0, %s29
      %s49 = sphi 0, %s49
      %s51 = sphi 0, %s49
      %s52 = sphi 0, %s51
      %s66 = sphi 0, %s52
      %s70 = sphi 0, %s70
      %s72 = sphi 0, %s70
      %s73 = sphi 0, %s72
      %s87 = sphi 0, %s73
      %s93 = sphi 0, %s95
      %s96 = sphi 0, %s93
      %s97 = sphi 0, %s96
      %s113 = sphi 0, %s97
    $region4: #{tpu_custom_call.1} parent=1 // loop_header_branch
      %18 = sbr.rel (%p16) target = $region8
    $region5: #{tpu_custom_call.1} parent=1 // loop_body
      %s20 = ssub.s32 %s15, 1
      %s21 = ssub.s32 %s15, 2
      %s22 = sadd.s32 %s15, 1
      %s23 = ssub.s32 %s15, %s22
      %p24 = scmp.eq.s32.totalorder %s23, 0
      %s26 = sadd.s32 %s25, 1
      %s27 = scalar_select %p24, %s25, %s26
      %p30 = pneg %p24
      %p31 = scmp.eq.s32.totalorder %s15, 1
      %p32 = por %p30, %p31
      %p33 = scmp.ne.s32.totalorder %s25, %s28
      %p34 = scmp.eq.s32.totalorder %s15, 0
      %p35 = por %p33, %p34
      %p36 = scmp.ne.s32.totalorder %s25, %s28
      %p37 = scmp.eq.s32.totalorder %s20, 1
      %p38 = por %p36, %p37
      %p39 = scmp.ne.s32.totalorder %s28, %s29
      %p40 = scmp.eq.s32.totalorder %s20, 0
      %p41 = por %p39, %p40
      %p42 = scmp.ne.s32.totalorder %s28, %s29
      %p43 = scmp.eq.s32.totalorder %s21, 1
      %p44 = por %p42, %p43
      %p46 = scmp.ne.s32.totalorder %s29, %s45
      %p47 = scmp.eq.s32.totalorder %s21, 0
      %p48 = por %p46, %p47
      %s50 = sadd.s32 %s49, 1
      %p53 = scmp.eq.s32.totalorder %s15, 1
      %p54 = scmp.ne.s32.totalorder %s49, %s51
      %p55 = scmp.eq.s32.totalorder %s15, 0
      %p56 = por %p54, %p55
      %p57 = scmp.ne.s32.totalorder %s49, %s51
      %p58 = scmp.eq.s32.totalorder %s20, 1
      %p59 = por %p57, %p58
      %p60 = scmp.ne.s32.totalorder %s51, %s52
      %p61 = scmp.eq.s32.totalorder %s20, 0
      %p62 = por %p60, %p61
      %p63 = scmp.ne.s32.totalorder %s51, %s52
      %p64 = scmp.eq.s32.totalorder %s21, 1
      %p65 = por %p63, %p64
      %p67 = scmp.ne.s32.totalorder %s52, %s66
      %p68 = scmp.eq.s32.totalorder %s21, 0
      %p69 = por %p67, %p68
      %s71 = sadd.s32 %s70, 1
      %p74 = scmp.eq.s32.totalorder %s15, 1
      %p75 = scmp.ne.s32.totalorder %s70, %s72
      %p76 = scmp.eq.s32.totalorder %s15, 0
      %p77 = por %p75, %p76
      %p78 = scmp.ne.s32.totalorder %s70, %s72
      %p79 = scmp.eq.s32.totalorder %s20, 1
      %p80 = por %p78, %p79
      %p81 = scmp.ne.s32.totalorder %s72, %s73
      %p82 = scmp.eq.s32.totalorder %s20, 0
      %p83 = por %p81, %p82
      %p84 = scmp.ne.s32.totalorder %s72, %s73
      %p85 = scmp.eq.s32.totalorder %s21, 1
      %p86 = por %p84, %p85
      %p88 = scmp.ne.s32.totalorder %s73, %s87
      %p89 = scmp.eq.s32.totalorder %s21, 0
      %p90 = por %p88, %p89
      %s91 = ssub.s32 %s15, %s22
      %p92 = scmp.eq.s32.totalorder %s91, 0
      %s94 = sadd.s32 %s93, 1
      %s95 = scalar_select %p92, %s93, %s94
      %p98 = pneg %p92
      %p99 = scmp.eq.s32.totalorder %s15, 1
      %p100 = por %p98, %p99
      %p101 = scmp.ne.s32.totalorder %s93, %s96
      %p102 = scmp.eq.s32.totalorder %s15, 0
      %p103 = por %p101, %p102
      %p104 = scmp.ne.s32.totalorder %s93, %s96
      %p105 = scmp.eq.s32.totalorder %s20, 1
      %p106 = por %p104, %p105
      %p107 = scmp.ne.s32.totalorder %s96, %s97
      %p108 = scmp.eq.s32.totalorder %s20, 0
      %p109 = por %p107, %p108
      %p110 = scmp.ne.s32.totalorder %s96, %s97
      %p111 = scmp.eq.s32.totalorder %s21, 1
      %p112 = por %p110, %p111
      %p114 = scmp.ne.s32.totalorder %s97, %s113
      %p115 = scmp.eq.s32.totalorder %s21, 0
      %p116 = por %p114, %p115
      %p117 = scmp.le.s32.totalorder 1, %s15
      %p118 = scmp.lt.s32.totalorder %s15, 3
      %p119 = pnand %p117, %p118
      %p120 = pneg %p119
      // Predicated region
      $region9: #{tpu_custom_call.1} parent=5 // pred_check
        _
      $region10: #{tpu_custom_call.1} parent=5 // pred_check_branch
        %122 = sbr.rel (%p119) target = $region12
      $region11: #{tpu_custom_call.1} parent=5 // pred_region
        %s123 = ssub.s32 %s15, 1
        // Predicated region
        $region13: #{tpu_custom_call.1} parent=11 // pred_check
          %p124 = pneg %p62
        $region14: #{tpu_custom_call.1} parent=11 // pred_check_branch
          %126 = sbr.rel (%p124) target = $region16
        $region15: #{tpu_custom_call.1} parent=11 // pred_region
          _
        $region16: #{tpu_custom_call.1} parent=11 // pred_fallthru
          _
        // Predicated region
        $region17: #{tpu_custom_call.1} parent=11 // pred_check
          %p127 = pneg %p83
        $region18: #{tpu_custom_call.1} parent=11 // pred_check_branch
          %129 = sbr.rel (%p127) target = $region20
        $region19: #{tpu_custom_call.1} parent=11 // pred_region
          _
        $region20: #{tpu_custom_call.1} parent=11 // pred_fallthru
          _
      $region12: #{tpu_custom_call.1} parent=5 // pred_fallthru
        _
      %p130 = scmp.lt.s32.totalorder %s15, 2
      // Predicated region
      $region21: #{tpu_custom_call.1} parent=5 // pred_check
        %p131 = pneg %p130
      $region22: #{tpu_custom_call.1} parent=5 // pred_check_branch
        %133 = sbr.rel (%p131) target = $region24
      $region23: #{tpu_custom_call.1} parent=5 // pred_region
        // Predicated region
        $region25: #{tpu_custom_call.1} parent=23 // pred_check
          %p134 = pneg %p35
        $region26: #{tpu_custom_call.1} parent=23 // pred_check_branch
          %136 = sbr.rel (%p134) target = $region28
        $region27: #{tpu_custom_call.1} parent=23 // pred_region
          %s137 = sand.u32 %s25, 1
          %s138 = scalar_lea.sflag [#allocation3], %s137
          %s139 = sand.u32 %s25, 1
          %s140 = smul.addr %s139, 64
          %s141 = scalar_lea.vmem [#allocation2], %s140
          %s143 = ssub.s32 1024, 1024
          %144 = vsyncadd %s138, %s143
          %s145 = smul.addr %s15, 8
          %s146 = smul.addr %s145, 128
          %s147 = scalar_lea.hbm %s0, %s146
          %s148 = sshll.u32 %s141, 4
          %s149 = int_to_ptr.vmem [resolvable:$true] %s148
          %154 = dma.hbm_to_vmem [thread:$0]  %s147, 1024, %s149, %s138, 256, 256, 16
        $region28: #{tpu_custom_call.1} parent=23 // pred_fallthru
          _
      $region24: #{tpu_custom_call.1} parent=5 // pred_fallthru
        _
      %p155 = scmp.le.s32.totalorder 1, %s15
      %p156 = scmp.lt.s32.totalorder %s15, 3
      %p157 = pnand %p155, %p156
      %p158 = pneg %p157
      // Predicated region
      $region29: #{tpu_custom_call.1} parent=5 // pred_check
        _
      $region30: #{tpu_custom_call.1} parent=5 // pred_check_branch
        %160 = sbr.rel (%p157) target = $region32
      $region31: #{tpu_custom_call.1} parent=5 // pred_region
        %s161 = ssub.s32 %s15, 1
        %s162 = sand.u32 %s28, 1
        %s163 = scalar_lea.sflag [#allocation3], %s162
        %s164 = sand.u32 %s28, 1
        %s165 = smul.addr %s164, 64
        %s166 = scalar_lea.vmem [#allocation2], %s165
        // Predicated region
        $region33: #{tpu_custom_call.1} parent=31 // pred_check
          %p167 = pneg %p41
        $region34: #{tpu_custom_call.1} parent=31 // pred_check_branch
          %169 = sbr.rel (%p167) target = $region36
        $region35: #{tpu_custom_call.1} parent=31 // pred_region
          %170 = dma.done %s163, 1024
        $region36: #{tpu_custom_call.1} parent=31 // pred_fallthru
          _
        %s171 = sand.u32 %s28, 1
        %s172 = scalar_lea.sflag [#allocation3], %s171
        %s173 = sand.u32 %s28, 1
        %s174 = smul.addr %s173, 64
        %s175 = scalar_lea.vmem [#allocation2], %s174
        %p176 = pneg %p41
        %p177 = pneg %p38
        %p178 = pneg %p62
        %p179 = pneg %p59
        %p180 = pneg %p83
        %p181 = pneg %p80
        %p182 = pneg %p109
        %p183 = pneg %p106
        %s184 = sand.u32 %s96, 1
        %s185 = scalar_lea.sflag [#allocation4], %s184
        %s186 = sand.u32 %s96, 1
        %s187 = smul.addr %s186, 64
        %s188 = scalar_lea.vmem [#allocation5], %s187
        %v189 = vld [vmem:[%s166] sm:$0xff]
        %v190 = vld [vmem:[%s166 + $0x8] sm:$0xff]
        %v191 = vld [vmem:[%s166 + $0x10] sm:$0xff]
        %v192 = vld [vmem:[%s166 + $0x18] sm:$0xff]
        %v193 = vld [vmem:[%s166 + $0x20] sm:$0xff]
        %v194 = vld [vmem:[%s166 + $0x28] sm:$0xff]
        %v195 = vld [vmem:[%s166 + $0x30] sm:$0xff]
        %v196 = vld [vmem:[%s166 + $0x38] sm:$0xff]
        %vm197 = vcmask 556032
        %v198 = vsel %vm197, %v190, 0.0
        %v199 = vadd.f32 %v189, %v198
        %200 = vadd.xlane.f32.xlu0 %v199
        %v201 = vpop.xlane.xlu0 %200
        %v202 = vsel %vm197, %v192, 0.0
        %v203 = vadd.f32 %v191, %v202
        %204 = vadd.xlane.f32.xlu0 %v203
        %v205 = vpop.xlane.xlu0 %204
        %v206 = vsel %vm197, %v194, 0.0
        %v207 = vadd.f32 %v193, %v206
        %208 = vadd.xlane.f32.xlu0 %v207
        %v209 = vpop.xlane.xlu0 %208
        %v210 = vsel %vm197, %v196, 0.0
        %v211 = vadd.f32 %v195, %v210
        %212 = vadd.xlane.f32.xlu0 %v211
        %v213 = vpop.xlane.xlu0 %212
        %v214 = vsel %vm197, %v190, -inf
        %v215 = vmax.f32 %v189, %v214
        %216 = vmax.xlane.f32.xlu0 %v215
        %v217 = vpop.xlane.xlu0 %216
        %v218 = vsel %vm197, %v192, -inf
        %v219 = vmax.f32 %v191, %v218
        %220 = vmax.xlane.f32.xlu0 %v219
        %v221 = vpop.xlane.xlu0 %220
        %v222 = vsel %vm197, %v194, -inf
        %v223 = vmax.f32 %v193, %v222
        %224 = vmax.xlane.f32.xlu0 %v223
        %v225 = vpop.xlane.xlu0 %224
        %v226 = vsel %vm197, %v196, -inf
        %v227 = vmax.f32 %v195, %v226
        %228 = vmax.xlane.f32.xlu0 %v227
        %v229 = vpop.xlane.xlu0 %228
        %v230 = vmul.f32 %v201, 0.0051020407
        %v231 = vmul.f32 %v205, 0.0051020407
        %v232 = vmul.f32 %v209, 0.0051020407
        %v233 = vmul.f32 %v213, 0.0051020407
        %v238 = vlaneseq
        %v239 = vand.u32 %v238, 127
        %v240 = vlaneseq
        %v241 = vshrl.u32 %v240, 7
        %v242 = vsub.s32 %v239, %v241
        %v243 = vrot.slane %v230, %v242
        %v244 = vadd.s32 %v239, 4294967288
        %v245 = vlaneseq
        %v246 = vshrl.u32 %v245, 7
        %v247 = vsub.s32 %v244, %v246
        %v248 = vrot.slane %v231, %v247
        %vm249 = vcmask 130112
        %v250 = vsel %vm249, %v248, %v243
        %v251 = vadd.s32 %v239, 4294967280
        %v252 = vlaneseq
        %v253 = vshrl.u32 %v252, 7
        %v254 = vsub.s32 %v251, %v253
        %v255 = vrot.slane %v232, %v254
        %vm256 = vcmask 195712
        %v257 = vsel %vm256, %v255, %v250
        %v258 = vadd.s32 %v239, 4294967272
        %v259 = vlaneseq
        %v260 = vshrl.u32 %v259, 7
        %v261 = vsub.s32 %v258, %v260
        %v262 = vrot.slane %v233, %v261
        %vm263 = vcmask 261312
        %v264 = vsel %vm263, %v262, %v257
        %v270 = vlaneseq
        %v271 = vshrl.u32 %v270, 7
        %v272 = vsub.s32 %v239, %v271
        %v273 = vrot.slane %v217, %v272
        %v274 = vlaneseq
        %v275 = vshrl.u32 %v274, 7
        %v276 = vsub.s32 %v244, %v275
        %v277 = vrot.slane %v221, %v276
        %v278 = vsel %vm249, %v277, %v273
        %v279 = vlaneseq
        %v280 = vshrl.u32 %v279, 7
        %v281 = vsub.s32 %v251, %v280
        %v282 = vrot.slane %v225, %v281
        %v283 = vsel %vm256, %v282, %v278
        %v284 = vlaneseq
        %v285 = vshrl.u32 %v284, 7
        %v286 = vsub.s32 %v258, %v285
        %v287 = vrot.slane %v229, %v286
        %v288 = vsel %vm263, %v287, %v283
        %vm290 = vcmask 1040384
        %v291 = vsel %vm290, %v264, %v288
        %v292 = vld [vmem:[%s1] sm:$0xff]
        %v293 = vld [vmem:[%s1 + $0x8] sm:$0xff]
        %v294 = vld [vmem:[%s1 + $0x10] sm:$0xff]
        %v295 = vld [vmem:[%s1 + $0x18] sm:$0xff]
        %vm296 = vcmask 261120
        %v298 = vsel %vm296, %v291, 0
        %300 = vmatprep.subr.mxu0 0.0
        %301 = vmatpush1.msra.mxu0 %v292
        %302 = vmatprep.subr.mxu0 0.0
        %303 = vmatpush1.msra.mxu0 %v293
        %304 = vmatprep.subr.mxu0 0.0
        %305 = vmatpush1.msra.mxu0 %v294
        %306 = vmatprep.subr.mxu0 0.0
        %307 = vmatpush1.msra.mxu0 %v295
        %308 = vmatprep.subr.mxu0 0.0
        %309 = vmatpush1.msra.mxu0 0.0
        %310 = vmatprep.subr.mxu0 0.0
        %311 = vmatpush1.msra.mxu0 0.0
        %312 = vmatprep.subr.mxu0 0.0
        %313 = vmatpush1.msra.mxu0 0.0
        %314 = vmatprep.subr.mxu0 0.0
        %315 = vmatpush1.msra.mxu0 0.0
        %316 = vmatprep.subr.mxu0 0.0
        %317 = vmatpush1.msra.mxu0 0.0
        %318 = vmatprep.subr.mxu0 0.0
        %319 = vmatpush1.msra.mxu0 0.0
        %320 = vmatprep.subr.mxu0 0.0
        %321 = vmatpush1.msra.mxu0 0.0
        %322 = vmatprep.subr.mxu0 0.0
        %323 = vmatpush1.msra.mxu0 0.0
        %324 = vmatprep.subr.mxu0 0.0
        %325 = vmatpush1.msra.mxu0 0.0
        %326 = vmatprep.subr.mxu0 0.0
        %327 = vmatpush1.msra.mxu0 0.0
        %328 = vmatprep.subr.mxu0 0.0
        %329 = vmatpush1.msra.mxu0 0.0
        %330 = vmatprep.subr.mxu0 0.0
        %331 = vmatpush1.msra.mxu0 0.0
        %332 = vmatprep.subr.mxu0 0.0
        %333 = vmatpush1.msra.mxu0 0.0
        %334 = vmatprep.subr.mxu0 0.0
        %335 = vmatpush1.msra.mxu0 0.0
        %336 = vmatprep.subr.mxu0 0.0
        %337 = vmatpush1.msra.mxu0 0.0
        %338 = vmatprep.subr.mxu0 0.0
        %339 = vmatpush1.msra.mxu0 0.0
        %340 = vmatprep.subr.mxu0 0.0
        %341 = vmatpush1.msra.mxu0 0.0
        %342 = vmatprep.subr.mxu0 0.0
        %343 = vmatpush1.msra.mxu0 0.0
        %344 = vmatprep.subr.mxu0 0.0
        %345 = vmatpush1.msra.mxu0 0.0
        %346 = vmatprep.subr.mxu0 0.0
        %347 = vmatpush1.msra.mxu0 0.0
        %348 = vmatprep.subr.mxu0 0.0
        %349 = vmatpush1.msra.mxu0 0.0
        %350 = vmatprep.subr.mxu0 0.0
        %351 = vmatpush1.msra.mxu0 0.0
        %352 = vmatprep.subr.mxu0 0.0
        %353 = vmatpush1.msra.mxu0 0.0
        %354 = vmatprep.subr.mxu0 0.0
        %355 = vmatpush1.msra.mxu0 0.0
        %356 = vmatprep.subr.mxu0 0.0
        %357 = vmatpush1.msra.mxu0 0.0
        %358 = vmatprep.subr.mxu0 0.0
        %359 = vmatpush1.msra.mxu0 0.0
        %360 = vmatprep.subr.mxu0 0.0
        %361 = vmatpush1.msra.mxu0 0.0
        %362 = vmatprep.subr.mxu0 0.0
        %363 = vmatpush1.msra.mxu0 0.0
        %364 = vmatprep.mubr.f32.mxu0 0.0
        %365 = vmatmul.mubr.f32.gmra.mrb[0].mxu0 %v298
        %v366 = vpop.f32.mrb[0].mxu0
        %v367 = vadd.f32 0.0, %v366
        %v368 = vpop.f32.mrb[0].mxu0
        %369 = vdwg.mxu0
        %v370 = vmax.f32 %v367, 0.0
        %v371 = vld [vmem:[%s2] sm:$0x3]
        %vm372 = vcmask 15360
        %v374 = vsel %vm372, %v370, 0
        %vm376 = vcmask 1041408
        %v378 = vsel %vm376, %v371, 0
        %380 = vmatprep.subr.mxu0 0.0
        %381 = vmatpush1.msra.mxu0 %v378
        %382 = vmatprep.subr.mxu0 0.0
        %383 = vmatpush1.msra.mxu0 0.0
        %384 = vmatprep.subr.mxu0 0.0
        %385 = vmatpush1.msra.mxu0 0.0
        %386 = vmatprep.subr.mxu0 0.0
        %387 = vmatpush1.msra.mxu0 0.0
        %388 = vmatprep.subr.mxu0 0.0
        %389 = vmatpush1.msra.mxu0 0.0
        %390 = vmatprep.subr.mxu0 0.0
        %391 = vmatpush1.msra.mxu0 0.0
        %392 = vmatprep.subr.mxu0 0.0
        %393 = vmatpush1.msra.mxu0 0.0
        %394 = vmatprep.subr.mxu0 0.0
        %395 = vmatpush1.msra.mxu0 0.0
        %396 = vmatprep.subr.mxu0 0.0
        %397 = vmatpush1.msra.mxu0 0.0
        %398 = vmatprep.subr.mxu0 0.0
        %399 = vmatpush1.msra.mxu0 0.0
        %400 = vmatprep.subr.mxu0 0.0
        %401 = vmatpush1.msra.mxu0 0.0
        %402 = vmatprep.subr.mxu0 0.0
        %403 = vmatpush1.msra.mxu0 0.0
        %404 = vmatprep.subr.mxu0 0.0
        %405 = vmatpush1.msra.mxu0 0.0
        %406 = vmatprep.subr.mxu0 0.0
        %407 = vmatpush1.msra.mxu0 0.0
        %408 = vmatprep.subr.mxu0 0.0
        %409 = vmatpush1.msra.mxu0 0.0
        %410 = vmatprep.subr.mxu0 0.0
        %411 = vmatpush1.msra.mxu0 0.0
        %412 = vmatprep.subr.mxu0 0.0
        %413 = vmatpush1.msra.mxu0 0.0
        %414 = vmatprep.subr.mxu0 0.0
        %415 = vmatpush1.msra.mxu0 0.0
        %416 = vmatprep.subr.mxu0 0.0
        %417 = vmatpush1.msra.mxu0 0.0
        %418 = vmatprep.subr.mxu0 0.0
        %419 = vmatpush1.msra.mxu0 0.0
        %420 = vmatprep.subr.mxu0 0.0
        %421 = vmatpush1.msra.mxu0 0.0
        %422 = vmatprep.subr.mxu0 0.0
        %423 = vmatpush1.msra.mxu0 0.0
        %424 = vmatprep.subr.mxu0 0.0
        %425 = vmatpush1.msra.mxu0 0.0
        %426 = vmatprep.subr.mxu0 0.0
        %427 = vmatpush1.msra.mxu0 0.0
        %428 = vmatprep.subr.mxu0 0.0
        %429 = vmatpush1.msra.mxu0 0.0
        %430 = vmatprep.subr.mxu0 0.0
        %431 = vmatpush1.msra.mxu0 0.0
        %432 = vmatprep.subr.mxu0 0.0
        %433 = vmatpush1.msra.mxu0 0.0
        %434 = vmatprep.subr.mxu0 0.0
        %435 = vmatpush1.msra.mxu0 0.0
        %436 = vmatprep.subr.mxu0 0.0
        %437 = vmatpush1.msra.mxu0 0.0
        %438 = vmatprep.subr.mxu0 0.0
        %439 = vmatpush1.msra.mxu0 0.0
        %440 = vmatprep.subr.mxu0 0.0
        %441 = vmatpush1.msra.mxu0 0.0
        %442 = vmatprep.subr.mxu0 0.0
        %443 = vmatpush1.msra.mxu0 0.0
        %444 = vmatprep.mubr.f32.mxu0 0.0
        %445 = vmatmul.mubr.f32.gmra.mrb[0].mxu0 %v374
        %v446 = vpop.f32.mrb[0].mxu0
        %v447 = vadd.f32 0.0, %v446
        %v448 = vpop.f32.mrb[0].mxu0
        %449 = vdwg.mxu0
        %v451 = vrot.slane %v447, 1
        %v453 = vadd.f32 %v447, %v451
        %v454 = vxor.u32 %v453, 2147483648
        %v455 = vmul.f32 %v454, 1.442695
        %v456 = vpow.pop %v455
        %v457 = vadd.f32 %v456, 1.0
        %v458 = vrcp.pop %v457
        %v459 = vmul.f32 1.0, %v458
        %v460 = vlaneseq
        %v461 = vshrl.u32 %v460, 7
        %v462 = vsub.s32 0, %v461
        %v463 = vrot.slane %v459, %v462
        %465 = vbcast.lane.b32.xlu0 %v463, 256
        %v466 = vpop.permute.xlu0 %465
        %s468 = sor.u32 256, 8
        %469 = vbcast.lane.b32.xlu0 %v463, %s468
        %v470 = vpop.permute.xlu0 %469
        %s472 = sor.u32 256, 16
        %473 = vbcast.lane.b32.xlu0 %v463, %s472
        %v474 = vpop.permute.xlu0 %473
        %s476 = sor.u32 256, 24
        %477 = vbcast.lane.b32.xlu0 %v463, %s476
        %v478 = vpop.permute.xlu0 %477
        %v479 = vmul.f32 %v189, %v466
        %v480 = vmul.f32 %v190, %v466
        %v481 = vmul.f32 %v191, %v470
        %v482 = vmul.f32 %v192, %v470
        %v483 = vmul.f32 %v193, %v474
        %v484 = vmul.f32 %v194, %v474
        %v485 = vmul.f32 %v195, %v478
        %v486 = vmul.f32 %v196, %v478
        %487 = vst [vmem:[%s188] sm:$0xff] %v479
        %488 = vst.msk [vmem:[%s188 + $0x8] sm:$0xff] %vm197, %v480
        %489 = vst [vmem:[%s188 + $0x10] sm:$0xff] %v481
        %490 = vst.msk [vmem:[%s188 + $0x18] sm:$0xff] %vm197, %v482
        %491 = vst [vmem:[%s188 + $0x20] sm:$0xff] %v483
        %492 = vst.msk [vmem:[%s188 + $0x28] sm:$0xff] %vm197, %v484
        %493 = vst [vmem:[%s188 + $0x30] sm:$0xff] %v485
        %494 = vst.msk [vmem:[%s188 + $0x38] sm:$0xff] %vm197, %v486
        %s495 = sand.u32 %s96, 1
        %s496 = scalar_lea.sflag [#allocation4], %s495
        %s497 = sand.u32 %s96, 1
        %s498 = smul.addr %s497, 64
        %s499 = scalar_lea.vmem [#allocation5], %s498
        // Predicated region
        $region37: #{tpu_custom_call.1} parent=31 // pred_check
          %p500 = pneg %p106
        $region38: #{tpu_custom_call.1} parent=31 // pred_check_branch
          %502 = sbr.rel (%p500) target = $region40
        $region39: #{tpu_custom_call.1} parent=31 // pred_region
          %s504 = ssub.s32 1024, 1024
          %505 = vsyncadd %s496, %s504
          %s506 = smul.addr %s20, 8
          %s507 = smul.addr %s506, 128
          %s508 = scalar_lea.hbm %s3, %s507
          %s509 = sshll.u32 %s499, 4
          %s510 = int_to_ptr.vmem [resolvable:$true] %s509
          %515 = dma.vmem_to_hbm [thread:$0]  %s510, 1024, %s508, %s496, 256, 256, 16
        $region40: #{tpu_custom_call.1} parent=31 // pred_fallthru
          _
      $region32: #{tpu_custom_call.1} parent=5 // pred_fallthru
        _
      %p516 = scmp.le.s32.totalorder 2, %s15
      // Predicated region
      $region41: #{tpu_custom_call.1} parent=5 // pred_check
        %p517 = pneg %p516
      $region42: #{tpu_custom_call.1} parent=5 // pred_check_branch
        %519 = sbr.rel (%p517) target = $region44
      $region43: #{tpu_custom_call.1} parent=5 // pred_region
        %s520 = ssub.s32 %s15, 2
        // Predicated region
        $region45: #{tpu_custom_call.1} parent=43 // pred_check
          %p521 = pneg %p112
        $region46: #{tpu_custom_call.1} parent=43 // pred_check_branch
          %523 = sbr.rel (%p521) target = $region48
        $region47: #{tpu_custom_call.1} parent=43 // pred_region
          %s524 = sand.u32 %s97, 1
          %s525 = scalar_lea.sflag [#allocation4], %s524
          %s526 = sand.u32 %s97, 1
          %s527 = smul.addr %s526, 64
          %s528 = scalar_lea.vmem [#allocation5], %s527
          %529 = dma.done %s525, 1024
        $region48: #{tpu_custom_call.1} parent=43 // pred_fallthru
          _
      $region44: #{tpu_custom_call.1} parent=5 // pred_fallthru
        _
    $region6: #{tpu_custom_call.1} parent=1 // loop_footer
      %s19 = sadd.s32 1, %s15
    $region7: #{tpu_custom_call.1} parent=1 // loop_footer_branch
      %14 = sbr.rel target = $region3
    $region8: #{tpu_custom_call.1} parent=1 // loop_exit
      _
    %530 = vsyncpa [#allocation3], 1
    %s531 = scalar_lea.sflag [#allocation3], 1
    %532 = vsyncpa %s531, 1
    %533 = vsyncpa [#allocation4], 1
    %s534 = scalar_lea.sflag [#allocation4], 1
    %535 = vsyncpa %s534, 1

</llo_original>
